<compile_context>
chip_gen: v7x
topology: tpu7x:2x2x1
jax: 0.10.0
libtpu: 0.0.40
codegen_flags: <defaults>
</compile_context>

<pallas_src>
import functools

import jax
import jax.numpy as jnp
from jax.experimental import pallas as pl
from jax.experimental.pallas import tpu as pltpu


NEG_MASK = -1e30  # finite "no edge" sentinel: safe under max/exp, no -inf NaN traps


def _tpu_vmem_capacity_bytes():
    try:
        cap = int(pltpu.get_tpu_info().vmem_capacity_bytes)
        if cap > 0:
            return cap
    except Exception:
        pass
    return 64 * 1024 * 1024  # conservative fallback (v7x-sized)


_VMEM_CAP = _tpu_vmem_capacity_bytes()
_VMEM_LIMIT = int(min(96 * 1024 * 1024, max(32 * 1024 * 1024, (_VMEM_CAP * 3) // 4)))
_DEFAULT_Q_TILE = 128 if _VMEM_CAP <= 64 * 1024 * 1024 else 256
_DEFAULT_KV_TILE = 512


def _elu(x):
    # ELU(alpha=1); exp only on the clamped branch so the dead branch never produces inf
    return jnp.where(x > 0, x, jnp.exp(jnp.minimum(x, 0.0)) - 1.0)


# ----------------------------------------------------------------------------- kernels

def input_proj_elu_kernel(x_ref, w_ref, b_ref, o_ref):
    """o = ELU(x @ W + b).  x:[tr, C]  W:[C, D] (pre-transposed, bf16)  b:[1, D] f32."""
    x = x_ref[...].astype(w_ref.dtype)
    y = jnp.dot(x, w_ref[...], preferred_element_type=jnp.float32) + b_ref[...]
    o_ref[...] = _elu(y).astype(o_ref.dtype)


def gat_layer_kernel(w_edge_ref,                       # SMEM [E] f32: softplus'd edge weights
                     xq_ref, xkv_ref, slot_ref,        # [tq,D] f32, [tk,D] f32, [tq,tk] int8
                     wq_ref, bq_ref,                   # folded q proj (scale baked in)
                     wkv_ref, bkv_ref,                 # folded, fused k|v proj [D,2D]
                     wo_ref, bo_ref,                   # out_proj [D,D]
                     o_ref,
                     q_scr, m_scr, l_scr, acc_scr,     # VMEM scratch, persist over kv axis
                     *, num_heads, num_edge_types, n_total, apply_elu):
    """One MultiHeadAttention GAT layer, flash-style over KV blocks with online softmax."""
    H = num_heads
    tq, D = xq_ref.shape
    tk = xkv_ref.shape[0]
    hd = D // H
    cdt = wq_ref.dtype                                 # bf16 compute dtype for the MXU
    ki = pl.program_id(1)
    nk = pl.num_programs(1)
    kv_padded = (((n_total + tk - 1) // tk) * tk) != n_total   # static

    # ---- per-q-tile init: folded+scaled q projection, reset running softmax stats ----
    @pl.when(ki == 0)
    def _init():
        q2 = jnp.dot(xq_ref[...].astype(cdt), wq_ref[...],
                     preferred_element_type=jnp.float32) + bq_ref[...]
        q_scr[...] = q2
        m_scr[...] = jnp.full_like(m_scr, NEG_MASK)
        l_scr[...] = jnp.zeros_like(l_scr)
        acc_scr[...] = jnp.zeros_like(acc_scr)

    # ---- fused K|V projection of this KV block (single [tk,D]x[D,2D] MXU matmul) ----
    xkv = xkv_ref[...]
    if kv_padded:  # zero OOB rows of a ragged last block so 0*garbage can't poison acc
        row_pos = ki * tk + jax.lax.broadcasted_iota(jnp.int32, (tk, 1), 0)
        xkv = jnp.where(row_pos < n_total, xkv, 0.0)
    kv = jnp.dot(xkv.astype(cdt), wkv_ref[...],
                 preferred_element_type=jnp.float32) + bkv_ref[...]
    k2 = kv[:, :D].astype(cdt)
    v2 = kv[:, D:].astype(cdt)

    # ---- additive edge mask for this (q, kv) tile from the int8 structural slot map ----
    slot = slot_ref[...].astype(jnp.int32)
    mask = jnp.full((tq, tk), NEG_MASK, dtype=jnp.float32)
    for t in range(num_edge_types):
        mask = jnp.where(slot == t, w_edge_ref[t], mask)
    if kv_padded:
        col_pos = ki * tk + jax.lax.broadcasted_iota(jnp.int32, (tq, tk), 1)
        mask = jnp.where(col_pos < n_total, mask, NEG_MASK)

    # ---- per-head online softmax (heads live in contiguous 32-lane blocks) ----
    q_all = q_scr[...].astype(cdt)                     # [tq, D], scale already applied
    for h in range(H):
        hs = slice(h * hd, (h + 1) * hd)
        q_h = q_all[:, hs]                             # [tq, hd]
        k_h = k2[:, hs]                                # [tk, hd]
        v_h = v2[:, hs]                                # [tk, hd]
        s = jax.lax.dot_general(q_h, k_h, (((1,), (1,)), ((), ())),
                                preferred_element_type=jnp.float32) + mask   # [tq, tk]
        m_prev = m_scr[:, hs]                          # [tq, hd] (lane-replicated per head)
        m_cur = jnp.max(s, axis=-1, keepdims=True)     # [tq, 1]
        m_new = jnp.maximum(m_prev, m_cur)             # [tq, hd]
        alpha = jnp.exp(m_prev[:, :1] - m_new[:, :1])  # [tq, 1]
        p = jnp.exp(s - m_new[:, :1])                  # [tq, tk] f32
        l_scr[:, hs] = alpha * l_scr[:, hs] + jnp.sum(p, axis=-1, keepdims=True)
        acc_scr[:, hs] = alpha * acc_scr[:, hs] + jnp.dot(
            p.astype(cdt), v_h, preferred_element_type=jnp.float32)
        m_scr[:, hs] = m_new

    # ---- finalize: normalize, single flat out_proj matmul, optional inter-layer ELU ----
    @pl.when(ki == nk - 1)
    def _finish():
        ctx = acc_scr[...] * pl.reciprocal(l_scr[...], approx=True)          # [tq, D]
        out = jnp.dot(ctx.astype(cdt), wo_ref[...],
                      preferred_element_type=jnp.float32) + bo_ref[...]
        if apply_elu:                                  # dropout = identity (eval mode)
            out = _elu(out)
        o_ref[...] = out.astype(o_ref.dtype)


# ----------------------------------------------------------------------------- wrappers

def input_projection_elu(x, w_t, b, *, row_tile=512):
    N, C = x.shape
    D = w_t.shape[1]
    tr = min(N, row_tile)
    return pl.pallas_call(
        input_proj_elu_kernel,
        out_shape=jax.ShapeDtypeStruct((N, D), jnp.float32),
        grid=(pl.cdiv(N, tr),),
        in_specs=[pl.BlockSpec((tr, C), lambda i: (i, 0)),
                  pl.BlockSpec((C, D), lambda i: (0, 0)),
                  pl.BlockSpec((1, D), lambda i: (0, 0))],
        out_specs=pl.BlockSpec((tr, D), lambda i: (i, 0)),
        compiler_params=pltpu.CompilerParams(
            dimension_semantics=("parallel",), vmem_limit_bytes=_VMEM_LIMIT),
    )(x, w_t, b)


def gat_layer(x, lp, slots, w_edge, *, num_heads, num_edge_types, apply_elu,
              q_tile=None, kv_tile=None):
    N, D = x.shape
    tq = min(N, q_tile if q_tile is not None else _DEFAULT_Q_TILE)
    tk = min(N, kv_tile if kv_tile is not None else _DEFAULT_KV_TILE)
    nq = pl.cdiv(N, tq)
    nk = pl.cdiv(N, tk)

    kern = functools.partial(gat_layer_kernel, num_heads=num_heads,
                             num_edge_types=num_edge_types, n_total=N,
                             apply_elu=apply_elu)

    def resident(shape):
        n = len(shape)
        return pl.BlockSpec(tuple(shape), lambda qi, ki: (0,) * n)

    in_specs = [
        pl.BlockSpec(memory_space=pltpu.MemorySpace.SMEM),      # edge-type weights (4 scalars)
        pl.BlockSpec((tq, D), lambda qi, ki: (qi, 0)),          # x rows of this q tile
        pl.BlockSpec((tk, D), lambda qi, ki: (ki, 0)),          # x rows of this kv tile
        pl.BlockSpec((tq, tk), lambda qi, ki: (qi, ki)),        # int8 slot-map tile
        resident(lp["wq"].shape), resident(lp["bq"].shape),
        resident(lp["wkv"].shape), resident(lp["bkv"].shape),
        resident(lp["wo"].shape), resident(lp["bo"].shape),
    ]

    flops = int(2 * N * D * D * (2 + 2 * nq) + 4 * N * N * D)
    transcendentals = int(num_heads * N * N + N * D)
    bytes_accessed = int(4 * N * D * (2 + nq) + N * N + 2 * 4 * D * D)

    return pl.pallas_call(
        kern,
        out_shape=jax.ShapeDtypeStruct((N, D), jnp.float32),
        grid=(nq, nk),
        in_specs=in_specs,
        out_specs=pl.BlockSpec((tq, D), lambda qi, ki: (qi, 0)),
        scratch_shapes=[pltpu.VMEM((tq, D), jnp.float32),   # folded+scaled q
                        pltpu.VMEM((tq, D), jnp.float32),   # running max (lane-replicated/head)
                        pltpu.VMEM((tq, D), jnp.float32),   # running denominator
                        pltpu.VMEM((tq, D), jnp.float32)],  # running numerator
        compiler_params=pltpu.CompilerParams(
            dimension_semantics=("parallel", "arbitrary"),
            vmem_limit_bytes=_VMEM_LIMIT),
        cost_estimate=pl.CostEstimate(flops=flops, transcendentals=transcendentals,
                                      bytes_accessed=bytes_accessed),
    )(w_edge, x, x, slots,
      lp["wq"], lp["bq"], lp["wkv"], lp["bkv"], lp["wo"], lp["bo"])


# ----------------------------------------------------------------------------- glue (plain JAX)

def build_edge_slots(num_nodes, edge_index, edge_type, num_edge_types=4):
    """Structural int8 slot map, built ONCE per graph (not per layer).

    slots[i, j] = edge-type weight index (0..E-1) for edge i->j (query=src, key=dst,
    matching torch's attn_mask[src, dst]), self-loop index where needed, -1 for no edge.
    """
    src, dst = edge_index[0], edge_index[1]
    slots = jnp.full((num_nodes, num_nodes), -1, dtype=jnp.int8)
    if edge_type is not None:
        vals = (edge_type - 1).astype(jnp.int8)         # edge types are 1-based
        diag_slot = min(3, num_edge_types - 1)          # self-loop uses edge-type index 3
    else:
        vals = jnp.zeros(src.shape, dtype=jnp.int8)     # all edges identical (weight 1.0)
        diag_slot = 0
    slots = slots.at[src, dst].set(vals)                # irregular scatter: no Pallas equivalent
    eye = jnp.eye(num_nodes, dtype=bool)
    slots = jnp.where(eye & (slots < 0), diag_slot, slots).astype(jnp.int8)
    return slots


# ----------------------------------------------------------------------------- params

def _init_linear(key, out_f, in_f):
    k1, k2 = jax.random.split(key)
    bound = 1.0 / (in_f ** 0.5)
    w = jax.random.uniform(k1, (out_f, in_f), minval=-bound, maxval=bound, dtype=jnp.float32)
    b = jax.random.uniform(k2, (1, out_f), minval=-bound, maxval=bound, dtype=jnp.float32)
    return w, b


def init_params(key, dim, num_heads, num_speakers, num_layers, speaker_embedding_dim=None):
    """PyTorch-style parameter layouts ([out, in] weights)."""
    if speaker_embedding_dim is None:
        speaker_embedding_dim = dim
    combined_dim = dim + speaker_embedding_dim
    keys = jax.random.split(key, 2 + num_layers)

    params = {}
    params["spk_emb"] = jax.random.normal(
        keys[0], (num_speakers, speaker_embedding_dim), dtype=jnp.float32)
    params["in_w"], params["in_b"] = _init_linear(keys[1], dim, combined_dim)

    layers = []
    for li in range(num_layers):
        lk = jax.random.split(keys[2 + li], 8)
        lp = {"edge_type_weights": jnp.ones((4,), dtype=jnp.float32)}  # nn.Parameter(ones(4))
        lp["qw"], lp["qb"] = _init_linear(lk[0], dim, dim)
        lp["kw"], lp["kb"] = _init_linear(lk[1], dim, dim)
        lp["vw"], lp["vb"] = _init_linear(lk[2], dim, dim)
        # nn.MultiheadAttention in_proj (3*dim, dim) split into q/k/v parts
        lp["iqw"], lp["iqb"] = _init_linear(lk[3], dim, dim)
        lp["ikw"], lp["ikb"] = _init_linear(lk[4], dim, dim)
        lp["ivw"], lp["ivb"] = _init_linear(lk[5], dim, dim)
        lp["ow"], lp["ob"] = _init_linear(lk[6], dim, dim)
        layers.append(lp)
    params["layers"] = layers
    return params


def prepare_params(params, num_heads):
    """One-time, wrapper-side restructuring into kernel-friendly layouts.

    Folds the module's q/k/v Linear layers into the MHA in_proj (two consecutive linears
    are one linear), bakes the 1/sqrt(head_dim) softmax scale into the folded q weight and
    bias, fuses k|v into one [D, 2D] weight.  Folds are done in f32; only the final
    products are cast to bf16 (per review correctness note).
    """
    D = params["in_w"].shape[0]
    hd = D // num_heads
    scale = 1.0 / float(hd) ** 0.5
    bf = jnp.bfloat16

    prep = {
        "spk_emb": params["spk_emb"],
        "win_t": params["in_w"].T.astype(bf),
        "bin": params["in_b"],
    }
    layers = []
    for lp in params["layers"]:
        wq = (lp["qw"].T @ lp["iqw"].T) * scale                     # [D, D]
        bq = (lp["qb"] @ lp["iqw"].T + lp["iqb"]) * scale           # [1, D]
        wk = lp["kw"].T @ lp["ikw"].T
        bk = lp["kb"] @ lp["ikw"].T + lp["ikb"]
        wv = lp["vw"].T @ lp["ivw"].T
        bv = lp["vb"] @ lp["ivw"].T + lp["ivb"]
        layers.append({
            "edge_type_weights": lp["edge_type_weights"],
            "wq": wq.astype(bf), "bq": bq,
            "wkv": jnp.concatenate([wk, wv], axis=1).astype(bf),    # [D, 2D]
            "bkv": jnp.concatenate([bk, bv], axis=1),               # [1, 2D]
            "wo": lp["ow"].T.astype(bf),                            # [D, D]
            "bo": lp["ob"],                                         # [1, D]
        })
    prep["layers"] = layers
    return prep


# ----------------------------------------------------------------------------- forward

def graph_attention_network_forward(prep, aggregated_x, speaker_ids, edge_index,
                                    edge_type=None, *, num_heads, num_edge_types=4):
    # TODO(synk): the torch module's early-return for num_nodes==0 / empty edges and the
    # SpeakerEmbedding dynamic id->index growth are host-side control flow, not kernels.
    # TODO(synk): for very small graphs, fusing all layers into one pallas_call (stacked
    # [L,...] weights, x held in VMEM) would remove per-layer launch + HBM round-trips.
    num_layers = len(prep["layers"])
    spk_emb = prep["spk_emb"][speaker_ids]                       # embedding gather (glue)
    x = jnp.concatenate([aggregated_x, spk_emb], axis=1)         # [N, dim + spk_dim]
    x = input_projection_elu(x, prep["win_t"], prep["bin"])      # Linear + ELU (dropout = id)

    slots = build_edge_slots(x.shape[0], edge_index, edge_type, num_edge_types)  # built once
    for i, lp in enumerate(prep["layers"]):
        if edge_type is not None:
            w_edge = jax.nn.softplus(lp["edge_type_weights"]).astype(jnp.float32)
        else:
            w_edge = jnp.ones((num_edge_types,), dtype=jnp.float32)
        x = gat_layer(x, lp, slots, w_edge, num_heads=num_heads,
                      num_edge_types=num_edge_types, apply_elu=(i < num_layers - 1))
    return x


# ----------------------------------------------------------------------------- demo

if __name__ == "__main__":
    dim = 128            # lane-dense feature dim (multiple of 128)
    num_heads = 4        # head_dim = 32
    num_layers = 2
    num_nodes = 16
    num_speakers = 3

    key = jax.random.PRNGKey(0)
    kp, kx = jax.random.split(key)
    params = init_params(kp, dim, num_heads, num_speakers, num_layers)
    prep = prepare_params(params, num_heads)

    aggregated_x = jax.random.normal(kx, (num_nodes, dim), dtype=jnp.float32)
    speaker_ids = (jnp.arange(num_nodes) % num_speakers).astype(jnp.int32)

    # edges: forward chain + a few backward edges, 1-based edge types
    fwd_src = jnp.arange(0, num_nodes - 1, dtype=jnp.int32)
    fwd_dst = jnp.arange(1, num_nodes, dtype=jnp.int32)
    back_src = jnp.array([3, 6, 9, 12, 15], dtype=jnp.int32)
    back_dst = jnp.array([1, 4, 7, 10, 13], dtype=jnp.int32)
    edge_index = jnp.stack([jnp.concatenate([fwd_src, back_src]),
                            jnp.concatenate([fwd_dst, back_dst])])
    edge_type = (jnp.arange(edge_index.shape[1]) % 4 + 1).astype(jnp.int32)

    out = graph_attention_network_forward(
        prep, aggregated_x, speaker_ids, edge_index, edge_type, num_heads=num_heads)
    out = jax.block_until_ready(out)
    assert out.shape == (num_nodes, dim)
    assert bool(jnp.all(jnp.isfinite(out)))
    print("KERNEL_OK")
</pallas_src>

<mosaic_0001>
module attributes {stable_mosaic.version = 11 : i64} {
  func.func @input_proj_elu_kernel(%arg0: i32, %arg1: memref<16x256xf32, #tpu.memory_space<vmem>>, %arg2: memref<256x128xbf16, #tpu.memory_space<vmem>>, %arg3: memref<1x128xf32, #tpu.memory_space<vmem>>, %arg4: memref<16x128xf32, #tpu.memory_space<vmem>>) attributes {dimension_semantics = [#tpu.dimension_semantics<parallel>], iteration_bounds = array<i64: 1>, scalar_prefetch = 0 : i64, scratch_operands = 0 : i64, tpu.core_type = #tpu.core_type<tc>, window_params = [{transform_indices = @transform_0, window_bounds = array<i64: 16, 256>}, {pipeline_mode = #tpu.pipeline_mode<synchronous>, transform_indices = @transform_1, window_bounds = array<i64: 256, 128>}, {pipeline_mode = #tpu.pipeline_mode<synchronous>, transform_indices = @transform_2, window_bounds = array<i64: 1, 128>}, {transform_indices = @transform_3, window_bounds = array<i64: 16, 128>}]} {
    %c0 = arith.constant 0 : index
    %c0_0 = arith.constant 0 : index
    %0 = vector.load %arg1[%c0, %c0_0] : memref<16x256xf32, #tpu.memory_space<vmem>>, vector<16x256xf32>
    %1 = arith.truncf %0 : vector<16x256xf32> to vector<16x256xbf16>
    %c0_1 = arith.constant 0 : index
    %c0_2 = arith.constant 0 : index
    %2 = vector.load %arg2[%c0_1, %c0_2] : memref<256x128xbf16, #tpu.memory_space<vmem>>, vector<256x128xbf16>
    %cst = arith.constant dense<0.000000e+00> : vector<16x128xf32>
    %3 = tpu.matmul %1, %2, %cst {dimension_numbers = #tpu.dot_dimension_numbers<[1], [0], [0], [1], [0, 0, 1, 1], [], []>} : vector<16x256xbf16>, vector<256x128xbf16>, vector<16x128xf32> -> vector<16x128xf32>
    %c0_3 = arith.constant 0 : index
    %c0_4 = arith.constant 0 : index
    %4 = vector.load %arg3[%c0_3, %c0_4] : memref<1x128xf32, #tpu.memory_space<vmem>>, vector<1x128xf32>
    %5 = vector.broadcast %4 : vector<1x128xf32> to vector<16x128xf32>
    %6 = arith.addf %3, %5 : vector<16x128xf32>
    %cst_5 = arith.constant 0.000000e+00 : f32
    %7 = vector.broadcast %cst_5 : f32 to vector<16x128xf32>
    %8 = arith.cmpf ogt, %6, %7 : vector<16x128xf32>
    %cst_6 = arith.constant 0.000000e+00 : f32
    %9 = vector.broadcast %cst_6 : f32 to vector<16x128xf32>
    %10 = arith.minimumf %6, %9 : vector<16x128xf32>
    %11 = math.exp %10 : vector<16x128xf32>
    %cst_7 = arith.constant 1.000000e+00 : f32
    %12 = vector.broadcast %cst_7 : f32 to vector<16x128xf32>
    %13 = arith.subf %11, %12 : vector<16x128xf32>
    %14 = arith.select %8, %6, %13 : vector<16x128xi1>, vector<16x128xf32>
    %c0_8 = arith.constant 0 : index
    %c0_9 = arith.constant 0 : index
    %15 = vector.load %arg4[%c0_8, %c0_9] : memref<16x128xf32, #tpu.memory_space<vmem>>, vector<16x128xf32>
    tpu.vector_store %arg4[%c0_8, %c0_9], %14 {strides = array<i32>} : memref<16x128xf32, #tpu.memory_space<vmem>>, vector<16x128xf32>,
    return
  }
  func.func @transform_0(%arg0: i32) -> (i32, i32) {
    %c0_i32 = arith.constant 0 : i32
    %c0_i32_0 = arith.constant 0 : i32
    return %arg0, %c0_i32 : i32, i32
  }
  func.func @transform_1(%arg0: i32) -> (i32, i32) {
    %c0_i32 = arith.constant 0 : i32
    %c0_i32_0 = arith.constant 0 : i32
    %c0_i32_1 = arith.constant 0 : i32
    return %c0_i32, %c0_i32_0 : i32, i32
  }
  func.func @transform_2(%arg0: i32) -> (i32, i32) {
    %c0_i32 = arith.constant 0 : i32
    %c0_i32_0 = arith.constant 0 : i32
    %c0_i32_1 = arith.constant 0 : i32
    return %c0_i32, %c0_i32_0 : i32, i32
  }
  func.func @transform_3(%arg0: i32) -> (i32, i32) {
    %c0_i32 = arith.constant 0 : i32
    %c0_i32_0 = arith.constant 0 : i32
    return %arg0, %c0_i32 : i32, i32
  }
}

</mosaic_0001>

<llo_original>
// kernel: tpu_custom_call.1
$region0: #{tpu_custom_call.1}
  #allocation0 [shape = 'u32[]', space=smem, size = 0x4, offset = 0x4, fixed_abs, tag = 'smem constant byte address 0x4 - core index']
  #allocation1 [shape = 'u32[144,128]{1,0:T(1,128)}', space=vmem, size = 0x12000, scoped, tag = 'internal scratch']
  %s0 = inlined_call_operand.hbm [shape: f32[16,256], index: 0, kind: input, shape index: {}]
  %s1 = inlined_call_operand.hbm [shape: bf16[256,128], index: 1, kind: input, shape index: {}]
  %s2 = inlined_call_operand.vmem [shape: f32[1,128], index: 2, kind: input, shape index: {}]
  %s3 = inlined_call_operand.hbm [shape: f32[16,128], index: 3, kind: output, shape index: {}]
  %s4 = sld [smem:[#allocation0]]
  $region30: #{tpu_custom_call.1} parent=0
    _
  %s6 = ssub.s32 1, %s4
  %s7 = scalar_select 0, %s6, %s4
  $region1: #{tpu_custom_call.1} parent=0
    #allocation2 [shape = 'u8[16384]{0}', space=vmem, size = 0x4000, scoped, tag = 'input window, operand 0, single buffered']
    #allocation3 [shape = 's32[1]{0}', space=sflag, size = 0x4, scoped, tag = 'scoped memory for tpu_custom_call.1']
    #allocation4 [shape = 's32[1]{0}', space=sflag, size = 0x4, scoped, tag = 'scoped memory for tpu_custom_call.1']
    #allocation5 [shape = 'u8[65536]{0}', space=vmem, size = 0x10000, scoped, tag = 'input window, operand 1, single buffered']
    #allocation6 [shape = 's32[1]{0}', space=sflag, size = 0x4, scoped, tag = 'scoped memory for tpu_custom_call.1']
    #allocation7 [shape = 'u8[8192]{0}', space=vmem, size = 0x2000, scoped, tag = 'output window, operand 0, single buffered']
    %8 = vsyncpa [#allocation3], 0
    %9 = vsyncpa [#allocation6], 0
    %10 = vsyncpa [#allocation4], 0
    // Predicated region
    $region2: #{tpu_custom_call.1} parent=1 // pred_check
      _
    $region3: #{tpu_custom_call.1} parent=1 // pred_check_branch
      %12 = sbr.rel (0) target = $region5
    $region4: #{tpu_custom_call.1} parent=1 // pred_region
      %s14 = ssub.s32 512, 512
      %15 = vsyncadd [#allocation3], %s14
      %s16 = sshll.u32 [#allocation2], 4
      %s17 = int_to_ptr.vmem [resolvable:$true] %s16
      %22 = dma.hbm_to_vmem [thread:$0]  %s0, 512, %s17, [#allocation3], 256, 256, 16
    $region5: #{tpu_custom_call.1} parent=1 // pred_fallthru
      _
    // Predicated region
    $region6: #{tpu_custom_call.1} parent=1 // pred_check
      _
    $region7: #{tpu_custom_call.1} parent=1 // pred_check_branch
      %24 = sbr.rel (0) target = $region9
    $region8: #{tpu_custom_call.1} parent=1 // pred_region
      %s26 = ssub.s32 2048, 2048
      %27 = vsyncadd [#allocation6], %s26
      %s28 = sshll.u32 [#allocation5], 4
      %s29 = int_to_ptr.vmem [resolvable:$true] %s28
      %34 = dma.hbm_to_vmem [thread:$0]  %s1, 2048, %s29, [#allocation6], 64, 64, 4
    $region9: #{tpu_custom_call.1} parent=1 // pred_fallthru
      _
    // Predicated region
    $region10: #{tpu_custom_call.1} parent=1 // pred_check
      _
    $region11: #{tpu_custom_call.1} parent=1 // pred_check_branch
      %36 = sbr.rel (0) target = $region13
    $region12: #{tpu_custom_call.1} parent=1 // pred_region
      _
    $region13: #{tpu_custom_call.1} parent=1 // pred_fallthru
      _
    // Predicated region
    $region14: #{tpu_custom_call.1} parent=1 // pred_check
      _
    $region15: #{tpu_custom_call.1} parent=1 // pred_check_branch
      %38 = sbr.rel (0) target = $region17
    $region16: #{tpu_custom_call.1} parent=1 // pred_region
      %39 = dma.done [#allocation3], 512
    $region17: #{tpu_custom_call.1} parent=1 // pred_fallthru
      _
    // Predicated region
    $region18: #{tpu_custom_call.1} parent=1 // pred_check
      _
    $region19: #{tpu_custom_call.1} parent=1 // pred_check_branch
      %41 = sbr.rel (0) target = $region21
    $region20: #{tpu_custom_call.1} parent=1 // pred_region
      %42 = dma.done [#allocation6], 2048
    $region21: #{tpu_custom_call.1} parent=1 // pred_fallthru
      _
    %v44 = vld [vmem:[#allocation2] sm:$0xff]
    %v45 = vld [vmem:[#allocation2 + $0x8] sm:$0xff]
    %v46 = vld [vmem:[#allocation2 + $0x10] sm:$0xff]
    %v47 = vld [vmem:[#allocation2 + $0x18] sm:$0xff]
    %v48 = vpack.c.bf16 %v46, %v44
    %v49 = vpack.c.bf16 %v47, %v45
    %v50 = vld [vmem:[#allocation5] sm:$0xf]
    %v51 = vld [vmem:[#allocation5 + $0x4] sm:$0xf]
    %v52 = vld [vmem:[#allocation5 + $0x8] sm:$0xf]
    %v53 = vld [vmem:[#allocation5 + $0xc] sm:$0xf]
    %v54 = vld [vmem:[#allocation5 + $0x10] sm:$0xf]
    %v55 = vld [vmem:[#allocation5 + $0x14] sm:$0xf]
    %v56 = vld [vmem:[#allocation5 + $0x18] sm:$0xf]
    %v57 = vld [vmem:[#allocation5 + $0x1c] sm:$0xf]
    %v58 = vld [vmem:[#allocation5 + $0x20] sm:$0xf]
    %v59 = vld [vmem:[#allocation5 + $0x24] sm:$0xf]
    %v60 = vld [vmem:[#allocation5 + $0x28] sm:$0xf]
    %v61 = vld [vmem:[#allocation5 + $0x2c] sm:$0xf]
    %v62 = vld [vmem:[#allocation5 + $0x30] sm:$0xf]
    %v63 = vld [vmem:[#allocation5 + $0x34] sm:$0xf]
    %v64 = vld [vmem:[#allocation5 + $0x38] sm:$0xf]
    %v65 = vld [vmem:[#allocation5 + $0x3c] sm:$0xf]
    %v66 = vld [vmem:[#allocation5 + $0x40] sm:$0xf]
    %v67 = vld [vmem:[#allocation5 + $0x44] sm:$0xf]
    %v68 = vld [vmem:[#allocation5 + $0x48] sm:$0xf]
    %v69 = vld [vmem:[#allocation5 + $0x4c] sm:$0xf]
    %v70 = vld [vmem:[#allocation5 + $0x50] sm:$0xf]
    %v71 = vld [vmem:[#allocation5 + $0x54] sm:$0xf]
    %v72 = vld [vmem:[#allocation5 + $0x58] sm:$0xf]
    %v73 = vld [vmem:[#allocation5 + $0x5c] sm:$0xf]
    %v74 = vld [vmem:[#allocation5 + $0x60] sm:$0xf]
    %v75 = vld [vmem:[#allocation5 + $0x64] sm:$0xf]
    %v76 = vld [vmem:[#allocation5 + $0x68] sm:$0xf]
    %v77 = vld [vmem:[#allocation5 + $0x6c] sm:$0xf]
    %v78 = vld [vmem:[#allocation5 + $0x70] sm:$0xf]
    %v79 = vld [vmem:[#allocation5 + $0x74] sm:$0xf]
    %v80 = vld [vmem:[#allocation5 + $0x78] sm:$0xf]
    %v81 = vld [vmem:[#allocation5 + $0x7c] sm:$0xf]
    %v82 = vld [vmem:[%s2] sm:$0x1]
    %v84 = vlaneseq
    %v85 = vshrl.u32 %v84, 7
    %v86 = vsub.s32 0, %v85
    %v87 = vrot.slane %v82, %v86
    %v121 = vunpack.c.l.b16 %v50
    %v122 = vunpack.c.l.b16 %v51
    %v123 = vunpack.c.l.b16 %v52
    %v124 = vunpack.c.l.b16 %v53
    %v125 = vunpack.c.l.b16 %v54
    %v126 = vunpack.c.l.b16 %v55
    %v127 = vunpack.c.l.b16 %v56
    %v128 = vunpack.c.l.b16 %v57
    %v129 = vunpack.c.l.b16 %v58
    %v130 = vunpack.c.l.b16 %v59
    %v131 = vunpack.c.l.b16 %v60
    %v132 = vunpack.c.l.b16 %v61
    %v133 = vunpack.c.l.b16 %v62
    %v134 = vunpack.c.l.b16 %v63
    %v135 = vunpack.c.l.b16 %v64
    %v136 = vunpack.c.l.b16 %v65
    %v137 = vunpack.c.l.b16 %v66
    %v138 = vunpack.c.l.b16 %v67
    %v139 = vunpack.c.l.b16 %v68
    %v140 = vunpack.c.l.b16 %v69
    %v141 = vunpack.c.l.b16 %v70
    %v142 = vunpack.c.l.b16 %v71
    %v143 = vunpack.c.l.b16 %v72
    %v144 = vunpack.c.l.b16 %v73
    %v145 = vunpack.c.l.b16 %v74
    %v146 = vunpack.c.l.b16 %v75
    %v147 = vunpack.c.l.b16 %v76
    %v148 = vunpack.c.l.b16 %v77
    %v149 = vunpack.c.l.b16 %v78
    %v150 = vunpack.c.l.b16 %v79
    %v151 = vunpack.c.l.b16 %v80
    %v152 = vunpack.c.l.b16 %v81
    %v153 = vpack.c.b16 %v122, %v121
    %v154 = vpack.c.b16 %v124, %v123
    %v155 = vpack.c.b16 %v126, %v125
    %v156 = vpack.c.b16 %v128, %v127
    %v157 = vpack.c.b16 %v130, %v129
    %v158 = vpack.c.b16 %v132, %v131
    %v159 = vpack.c.b16 %v134, %v133
    %v160 = vpack.c.b16 %v136, %v135
    %v161 = vpack.c.b16 %v138, %v137
    %v162 = vpack.c.b16 %v140, %v139
    %v163 = vpack.c.b16 %v142, %v141
    %v164 = vpack.c.b16 %v144, %v143
    %v165 = vpack.c.b16 %v146, %v145
    %v166 = vpack.c.b16 %v148, %v147
    %v167 = vpack.c.b16 %v150, %v149
    %v168 = vpack.c.b16 %v152, %v151
    %185 = vmatprep.subr.bf16.mxu0 0
    %186 = vmatpush1.bf16.msra.mxu0 %v153
    %187 = vmatprep.subr.bf16.mxu0 0
    %188 = vmatpush1.bf16.msra.mxu0 %v154
    %189 = vmatprep.subr.bf16.mxu0 0
    %190 = vmatpush1.bf16.msra.mxu0 %v155
    %191 = vmatprep.subr.bf16.mxu0 0
    %192 = vmatpush1.bf16.msra.mxu0 %v156
    %193 = vmatprep.subr.bf16.mxu0 0
    %194 = vmatpush1.bf16.msra.mxu0 %v157
    %195 = vmatprep.subr.bf16.mxu0 0
    %196 = vmatpush1.bf16.msra.mxu0 %v158
    %197 = vmatprep.subr.bf16.mxu0 0
    %198 = vmatpush1.bf16.msra.mxu0 %v159
    %199 = vmatprep.subr.bf16.mxu0 0
    %200 = vmatpush1.bf16.msra.mxu0 %v160
    %201 = vmatprep.subr.bf16.mxu0 0
    %202 = vmatpush1.bf16.msra.mxu0 %v161
    %203 = vmatprep.subr.bf16.mxu0 0
    %204 = vmatpush1.bf16.msra.mxu0 %v162
    %205 = vmatprep.subr.bf16.mxu0 0
    %206 = vmatpush1.bf16.msra.mxu0 %v163
    %207 = vmatprep.subr.bf16.mxu0 0
    %208 = vmatpush1.bf16.msra.mxu0 %v164
    %209 = vmatprep.subr.bf16.mxu0 0
    %210 = vmatpush1.bf16.msra.mxu0 %v165
    %211 = vmatprep.subr.bf16.mxu0 0
    %212 = vmatpush1.bf16.msra.mxu0 %v166
    %213 = vmatprep.subr.bf16.mxu0 0
    %214 = vmatpush1.bf16.msra.mxu0 %v167
    %215 = vmatprep.subr.bf16.mxu0 0
    %216 = vmatpush1.bf16.msra.mxu0 %v168
    %217 = vmatprep.mubr.bf16.mxu0 %v49
    %218 = vmatmul.mubr.bf16.gmra.mrb[0].mxu0 %v48
    %v219 = vpop.f32.mrb[0].mxu0
    %v220 = vadd.f32 %v87, %v219
    %v221 = vpop.f32.mrb[0].mxu0
    %v222 = vpop.f32.mrb[0].mxu0
    %v223 = vadd.f32 %v87, %v222
    %v224 = vpop.f32.mrb[0].mxu0
    %225 = vdwg.mxu0
    %vm226 = vcmp.gt.f32.partialorder %v220, 0.0
    %vm227 = vcmp.gt.f32.partialorder %v223, 0.0
    %v228 = vmin.f32 %v220, 0.0
    %v229 = vmin.f32 %v223, 0.0
    %v230 = vmul.f32 %v228, 1.442695
    %v231 = vpow.pop %v230
    %v232 = vmul.f32 %v229, 1.442695
    %v233 = vpow.pop %v232
    %v234 = vsub.f32 %v231, 1.0
    %v235 = vsub.f32 %v233, 1.0
    %v236 = vsel %vm226, %v220, %v234
    %v237 = vsel %vm227, %v223, %v235
    %238 = vst [vmem:[#allocation7] sm:$0xff] %v236
    %239 = vst [vmem:[#allocation7 + $0x8] sm:$0xff] %v237
    // Predicated region
    $region22: #{tpu_custom_call.1} parent=1 // pred_check
      _
    $region23: #{tpu_custom_call.1} parent=1 // pred_check_branch
      %241 = sbr.rel (0) target = $region25
    $region24: #{tpu_custom_call.1} parent=1 // pred_region
      %s243 = ssub.s32 256, 256
      %244 = vsyncadd [#allocation4], %s243
      %s245 = sshll.u32 [#allocation7], 4
      %s246 = int_to_ptr.vmem [resolvable:$true] %s245
      %251 = dma.vmem_to_hbm [thread:$0]  %s246, 256, %s3, [#allocation4], 128, 128, 8
    $region25: #{tpu_custom_call.1} parent=1 // pred_fallthru
      _
    // Predicated region
    $region26: #{tpu_custom_call.1} parent=1 // pred_check
      _
    $region27: #{tpu_custom_call.1} parent=1 // pred_check_branch
      %253 = sbr.rel (0) target = $region29
    $region28: #{tpu_custom_call.1} parent=1 // pred_region
      %254 = dma.done [#allocation4], 256
    $region29: #{tpu_custom_call.1} parent=1 // pred_fallthru
      _
    %255 = vsyncpa [#allocation3], 1
    %256 = vsyncpa [#allocation6], 1
    %257 = vsyncpa [#allocation4], 1

</llo_original>
